<compile_context>
chip_gen: v5e
topology: v5e:2x2
jax: 0.10.0
libtpu: 0.0.40
codegen_flags: <defaults>
</compile_context>

<pallas_src>
import functools

import jax
import jax.numpy as jnp
import numpy as np
from jax.experimental import pallas as pl
from jax.experimental.pallas import tpu as pltpu

LN_EPS = 1e-5  # torch.nn.LayerNorm default


def _round_up(a, b):
    return -(-a // b) * b


def _vmem_plan():
    """(vmem_limit_bytes or None, block-budget bytes) per TPU generation."""
    kind = ""
    try:
        kind = jax.devices()[0].device_kind.lower()
    except Exception:
        pass
    if "v5 lite" in kind or "v5e" in kind:
        limit = 64 * 2**20          # physical 128 MiB, scoped default only 16 MiB
    elif "v6" in kind:
        limit = 80 * 2**20          # physical 128 MiB
    elif "v5" in kind or "v4" in kind:
        limit = 64 * 2**20          # v4 / v5p: physical 128 MiB
    elif "7" in kind:
        limit = 40 * 2**20          # v7x: 64 MiB VMEM per TensorCore
    else:
        # Unknown generation: leave the compiler's default scoped limit alone
        # and size blocks against a conservative budget.
        return None, 10 * 2**20
    return limit, int(limit * 0.65)  # ~35% headroom for pipeline/compiler scratch


def _compute_dtype_for(x_dtype):
    """bf16 elementwise math on v6e/v7x for bf16 inputs; f32 otherwise (v5e has no bf16 VPU)."""
    if jnp.dtype(x_dtype) != jnp.dtype(jnp.bfloat16):
        return jnp.float32
    kind = ""
    try:
        kind = jax.devices()[0].device_kind.lower()
    except Exception:
        pass
    if "v5" in kind:
        return jnp.float32
    return jnp.bfloat16


def _temporal_conv_kernel(x_ref, p_ref, o_ref, *, k1, k2, ncl_input,
                          compute_dtype, mxu_ln):
    # x_ref: [bt, t, hs] (time-major) or [bt, hs, t] (NCL when ncl_input=True)
    # p_ref: [k1+k2+6, hs] packed params: w1 taps, b1, g1, be1, w2 taps, b2, g2, be2
    # o_ref: [bt, hs]
    if ncl_input:
        # One XLU permute so features land on lanes (only used when t >= 128).
        x = jnp.transpose(x_ref[...].astype(compute_dtype), (0, 2, 1))
    else:
        x = x_ref[...].astype(compute_dtype)

    p = p_ref[...].astype(jnp.float32)
    w1 = p[0:k1].astype(compute_dtype)             # [k1, hs]
    b1 = p[k1:k1 + 1].astype(compute_dtype)        # [1, hs]
    g1 = p[k1 + 1:k1 + 2]                          # LN params stay f32
    be1 = p[k1 + 2:k1 + 3]
    o2 = k1 + 3
    w2 = p[o2:o2 + k2].astype(compute_dtype)
    b2 = p[o2 + k2:o2 + k2 + 1].astype(compute_dtype)
    g2 = p[o2 + k2 + 1:o2 + k2 + 2]
    be2 = p[o2 + k2 + 2:o2 + k2 + 3]

    bt, _, hs = x.shape
    inv_h = jnp.float32(1.0 / hs)
    # Ones column for MXU-based LayerNorm reductions (built once, reused twice).
    ones_col = jnp.ones((bt, hs, 1), compute_dtype) if mxu_ln else None

    def dwconv(inp, w, b, k):
        # Depthwise "valid" conv along time (sublane axis), batch-vectorized;
        # tap 0 fused with the bias add.
        t_out = inp.shape[1] - k + 1
        acc = inp[:, 0:t_out, :] * w[0:1][None] + b[None]
        for tap in range(1, k):
            acc = acc + inp[:, tap:tap + t_out, :] * w[tap:tap + 1][None]
        return acc

    def ln_relu(inp, g, be):
        # LayerNorm over the feature (lane) axis with f32 statistics, then ReLU.
        x32 = inp.astype(jnp.float32)
        if mxu_ln:
            # Offload the two lane reductions to the idle MXU (exact f32 accumulate
            # of bf16 operands); XLU keeps only the conv-tap realignments / max.
            mu = jnp.einsum('bth,bhk->btk', inp, ones_col,
                            preferred_element_type=jnp.float32) * inv_h
            c = x32 - mu
            cc = (c * c).astype(compute_dtype)
            var = jnp.einsum('bth,bhk->btk', cc, ones_col,
                             preferred_element_type=jnp.float32) * inv_h
        else:
            mu = jnp.mean(x32, axis=-1, keepdims=True)
            c = x32 - mu
            var = jnp.mean(c * c, axis=-1, keepdims=True)
        out = c * jax.lax.rsqrt(var + LN_EPS) * g[None] + be[None]
        return jnp.maximum(out, 0.0).astype(compute_dtype)

    # TODO(synk): for very long t, chunk the time axis in-kernel with a
    # (k1+k2-2) halo and carry the running max so y/z never materialize at full
    # length (cuts peak live VMEM to ~1 block + chunk).
    y = ln_relu(dwconv(x, w1, b1, k1), g1, be1)
    z = ln_relu(dwconv(y, w2, b2, k2), g2, be2)

    # AdaptiveMaxPool1d(1): max over time (sublane reduction) -> [bt, hs].
    o_ref[...] = jnp.max(z.astype(jnp.float32), axis=1).astype(o_ref.dtype)


@functools.partial(jax.jit, static_argnames=("max_batch_tile",))
def temporal_conv_forward(x_bht, w1, b1, g1, be1, w2, b2, g2, be2, *,
                          max_batch_tile=512):
    """x_bht: [bs, hs, t] (PyTorch NCL layout). Returns [bs, hs] float32."""
    bs, hs, t = x_bht.shape
    k1 = w1.shape[1]
    k2 = w2.shape[1]
    assert t >= k1 + k2 - 1, "sequence too short for two valid convs"

    compute_dtype = _compute_dtype_for(x_bht.dtype)
    # MXU-based LN reductions only where they are numerically "for free"
    # (bf16 operands, exact f32 accumulation); f32 inputs keep XLU reductions.
    mxu_ln = compute_dtype == jnp.bfloat16

    # Pack all parameters into one [k1+k2+6, hs] array (single input / DMA).
    params = jnp.concatenate(
        [jnp.transpose(w1, (1, 0)), b1[None], g1[None], be1[None],
         jnp.transpose(w2, (1, 0)), b2[None], g2[None], be2[None]],
        axis=0).astype(jnp.float32)

    # Layout: for short sequences present the input time-major [bs, t, hs] so
    # hs is lane-dense (one wrapper-side HBM pass is cheaper than 8x-padded
    # vregs + a per-step XLU transpose); keep NCL when t itself is lane-sized.
    ncl_input = t >= 128
    if ncl_input:
        x_in = x_bht
        sub, lane = hs, t                       # landed block = [bt, hs, t]
    else:
        x_in = jnp.transpose(x_bht, (0, 2, 1))  # [bs, t, hs]
        sub, lane = t, hs                       # landed block = [bt, t, hs]

    # Layout-aware VMEM accounting for the batch-tile choice:
    #   2x double-buffered input block (padded to 8 sublanes x 128 lanes)
    # + ~6 live compute blocks (f32/compute copies, conv/LN intermediates and
    #   tap-slice temporaries), all in the time-major [bt, t, hs] layout.
    in_itemsize = jnp.dtype(x_bht.dtype).itemsize
    in_row = _round_up(sub, 8) * _round_up(lane, 128) * in_itemsize
    work_row = _round_up(t, 8) * _round_up(hs, 128) * 4   # conservative: f32
    per_row = 2 * in_row + 6 * work_row
    vmem_limit, vmem_budget = _vmem_plan()

    cap = max(1, vmem_budget // per_row)
    bt = min(max_batch_tile, bs, cap)
    if bs >= 16:
        # Keep >= 2 grid tiles so the "parallel" batch axis can be split across
        # v7x's two TensorCores (harmless on single-TC generations).
        bt = min(bt, max(8, (((bs + 1) // 2) // 8) * 8))
    if bt >= 8:
        # Sublane-dense output stores; rounding DOWN only, never exceeds the cap.
        bt = (bt // 8) * 8
    # (bt < 8 is only reached for extreme hs*t; accepted as sublane-masked tiles
    #  until the time-chunked kernel lands — see TODO in the kernel body.)

    n_tiles = -(-bs // bt)
    bs_pad = n_tiles * bt
    if bs_pad != bs:
        # Padded rows are independent, stay finite (var=0 -> rsqrt(eps)) and
        # are sliced off below.
        x_in = jnp.pad(x_in, ((0, bs_pad - bs), (0, 0), (0, 0)))

    if ncl_input:
        x_spec = pl.BlockSpec((bt, hs, t), lambda b: (b, 0, 0))
    else:
        x_spec = pl.BlockSpec((bt, t, hs), lambda b: (b, 0, 0))

    kernel = functools.partial(_temporal_conv_kernel, k1=k1, k2=k2,
                               ncl_input=ncl_input,
                               compute_dtype=compute_dtype, mxu_ln=mxu_ln)
    out = pl.pallas_call(
        kernel,
        out_shape=jax.ShapeDtypeStruct((bs_pad, hs), jnp.float32),
        grid=(n_tiles,),
        in_specs=[
            x_spec,
            pl.BlockSpec((k1 + k2 + 6, hs), lambda b: (0, 0)),  # packed params
        ],
        out_specs=pl.BlockSpec((bt, hs), lambda b: (b, 0)),
        compiler_params=pltpu.CompilerParams(
            dimension_semantics=("parallel",),
            vmem_limit_bytes=vmem_limit),
    )(x_in, params)
    return out[:bs]


def reference_forward(x_bht, w1, b1, g1, be1, w2, b2, g2, be2):
    """Pure-JAX reference matching the PyTorch module exactly."""
    def dwconv(x, w, b):              # x: [bs, hs, t], w: [hs, K], b: [hs]
        K = w.shape[1]
        t_out = x.shape[-1] - K + 1
        y = jnp.zeros(x.shape[:2] + (t_out,), jnp.float32) + b[None, :, None]
        for k in range(K):
            y = y + x[:, :, k:k + t_out] * w[:, k][None, :, None]
        return y

    def ln_over_channels(x, g, be):   # x: [bs, hs, t]; LN over hs
        xt = jnp.transpose(x, (0, 2, 1))
        mu = jnp.mean(xt, -1, keepdims=True)
        var = jnp.mean((xt - mu) ** 2, -1, keepdims=True)
        xt = (xt - mu) * jax.lax.rsqrt(var + LN_EPS) * g + be
        return jnp.transpose(xt, (0, 2, 1))

    x = dwconv(x_bht, w1, b1)
    x = jnp.maximum(ln_over_channels(x, g1, be1), 0.0)
    x = dwconv(x, w2, b2)
    x = jnp.maximum(ln_over_channels(x, g2, be2), 0.0)
    return jnp.max(x, axis=-1)        # [bs, hs]


if __name__ == "__main__":
    bs, hs, t = 2, 32, 16
    k1 = k2 = 3

    key = jax.random.PRNGKey(0)
    kx, kw1, kb1, kw2, kb2 = jax.random.split(key, 5)

    x = jax.random.normal(kx, (bs, hs, t), jnp.float32)

    # PyTorch-style uniform init bound 1/sqrt(fan_in) = 1/sqrt(K).
    bnd1 = 1.0 / np.sqrt(k1)
    bnd2 = 1.0 / np.sqrt(k2)
    w1 = jax.random.uniform(kw1, (hs, k1), jnp.float32, -bnd1, bnd1)  # conv1.weight[:, 0, :]
    b1 = jax.random.uniform(kb1, (hs,), jnp.float32, -bnd1, bnd1)
    w2 = jax.random.uniform(kw2, (hs, k2), jnp.float32, -bnd2, bnd2)  # conv2.weight[:, 0, :]
    b2 = jax.random.uniform(kb2, (hs,), jnp.float32, -bnd2, bnd2)
    g1 = jnp.ones((hs,), jnp.float32)
    be1 = jnp.zeros((hs,), jnp.float32)
    g2 = jnp.ones((hs,), jnp.float32)
    be2 = jnp.zeros((hs,), jnp.float32)

    out = temporal_conv_forward(x, w1, b1, g1, be1, w2, b2, g2, be2)
    out = jax.block_until_ready(out)

    ref = reference_forward(x, w1, b1, g1, be1, w2, b2, g2, be2)
    np.testing.assert_allclose(np.asarray(out), np.asarray(ref),
                               rtol=1e-5, atol=1e-5)
    print("KERNEL_OK")
</pallas_src>

<mosaic_0001>
module attributes {stable_mosaic.version = 11 : i64} {
  func.func @_temporal_conv_kernel(%arg0: i32, %arg1: memref<2x16x32xf32, #tpu.memory_space<vmem>>, %arg2: memref<12x32xf32, #tpu.memory_space<vmem>>, %arg3: memref<2x32xf32, #tpu.memory_space<vmem>>) attributes {dimension_semantics = [#tpu.dimension_semantics<parallel>], iteration_bounds = array<i64: 1>, scalar_prefetch = 0 : i64, scratch_operands = 0 : i64, tpu.core_type = #tpu.core_type<tc>, window_params = [{transform_indices = @transform_0, window_bounds = array<i64: 2, 16, 32>}, {pipeline_mode = #tpu.pipeline_mode<synchronous>, transform_indices = @transform_1, window_bounds = array<i64: 12, 32>}, {transform_indices = @transform_2, window_bounds = array<i64: 2, 32>}]} {
    %c0 = arith.constant 0 : index
    %c0_0 = arith.constant 0 : index
    %c0_1 = arith.constant 0 : index
    %0 = vector.load %arg1[%c0, %c0_0, %c0_1] : memref<2x16x32xf32, #tpu.memory_space<vmem>>, vector<2x16x32xf32>
    %c0_2 = arith.constant 0 : index
    %c0_3 = arith.constant 0 : index
    %1 = vector.load %arg2[%c0_2, %c0_3] : memref<12x32xf32, #tpu.memory_space<vmem>>, vector<12x32xf32>
    %2 = vector.extract_strided_slice %1 {offsets = [0, 0], sizes = [3, 32], strides = [1, 1]} : vector<12x32xf32> to vector<3x32xf32>
    %3 = vector.extract_strided_slice %1 {offsets = [3, 0], sizes = [1, 32], strides = [1, 1]} : vector<12x32xf32> to vector<1x32xf32>
    %4 = vector.extract_strided_slice %1 {offsets = [4, 0], sizes = [1, 32], strides = [1, 1]} : vector<12x32xf32> to vector<1x32xf32>
    %5 = vector.extract_strided_slice %1 {offsets = [5, 0], sizes = [1, 32], strides = [1, 1]} : vector<12x32xf32> to vector<1x32xf32>
    %6 = vector.extract_strided_slice %1 {offsets = [6, 0], sizes = [3, 32], strides = [1, 1]} : vector<12x32xf32> to vector<3x32xf32>
    %7 = vector.extract_strided_slice %1 {offsets = [9, 0], sizes = [1, 32], strides = [1, 1]} : vector<12x32xf32> to vector<1x32xf32>
    %8 = vector.extract_strided_slice %1 {offsets = [10, 0], sizes = [1, 32], strides = [1, 1]} : vector<12x32xf32> to vector<1x32xf32>
    %9 = vector.extract_strided_slice %1 {offsets = [11, 0], sizes = [1, 32], strides = [1, 1]} : vector<12x32xf32> to vector<1x32xf32>
    %10 = vector.extract_strided_slice %0 {offsets = [0, 0, 0], sizes = [2, 14, 32], strides = [1, 1, 1]} : vector<2x16x32xf32> to vector<2x14x32xf32>
    %11 = vector.extract_strided_slice %2 {offsets = [0, 0], sizes = [1, 32], strides = [1, 1]} : vector<3x32xf32> to vector<1x32xf32>
    %12 = vector.shape_cast %11 : vector<1x32xf32> to vector<1x1x32xf32>
    %13 = vector.broadcast %12 : vector<1x1x32xf32> to vector<2x14x32xf32>
    %14 = arith.mulf %10, %13 : vector<2x14x32xf32>
    %15 = vector.shape_cast %3 : vector<1x32xf32> to vector<1x1x32xf32>
    %16 = vector.broadcast %15 : vector<1x1x32xf32> to vector<2x14x32xf32>
    %17 = arith.addf %14, %16 : vector<2x14x32xf32>
    %18 = vector.extract_strided_slice %0 {offsets = [0, 1, 0], sizes = [2, 14, 32], strides = [1, 1, 1]} : vector<2x16x32xf32> to vector<2x14x32xf32>
    %19 = vector.extract_strided_slice %2 {offsets = [1, 0], sizes = [1, 32], strides = [1, 1]} : vector<3x32xf32> to vector<1x32xf32>
    %20 = vector.shape_cast %19 : vector<1x32xf32> to vector<1x1x32xf32>
    %21 = vector.broadcast %20 : vector<1x1x32xf32> to vector<2x14x32xf32>
    %22 = arith.mulf %18, %21 : vector<2x14x32xf32>
    %23 = arith.addf %17, %22 : vector<2x14x32xf32>
    %24 = vector.extract_strided_slice %0 {offsets = [0, 2, 0], sizes = [2, 14, 32], strides = [1, 1, 1]} : vector<2x16x32xf32> to vector<2x14x32xf32>
    %25 = vector.extract_strided_slice %2 {offsets = [2, 0], sizes = [1, 32], strides = [1, 1]} : vector<3x32xf32> to vector<1x32xf32>
    %26 = vector.shape_cast %25 : vector<1x32xf32> to vector<1x1x32xf32>
    %27 = vector.broadcast %26 : vector<1x1x32xf32> to vector<2x14x32xf32>
    %28 = arith.mulf %24, %27 : vector<2x14x32xf32>
    %29 = arith.addf %23, %28 : vector<2x14x32xf32>
    %cst = arith.constant dense<0.000000e+00> : vector<2x14xf32>
    %30 = vector.multi_reduction <add>, %29, %cst [2] : vector<2x14x32xf32> to vector<2x14xf32>
    %31 = vector.shape_cast %30 : vector<2x14xf32> to vector<2x14x1xf32>
    %cst_4 = arith.constant 3.200000e+01 : f32
    %32 = vector.broadcast %cst_4 : f32 to vector<2x14x1xf32>
    %33 = arith.divf %31, %32 : vector<2x14x1xf32>
    %34 = vector.broadcast %33 : vector<2x14x1xf32> to vector<2x14x32xf32>
    %35 = arith.subf %29, %34 : vector<2x14x32xf32>
    %36 = arith.mulf %35, %35 : vector<2x14x32xf32>
    %cst_5 = arith.constant dense<0.000000e+00> : vector<2x14xf32>
    %37 = vector.multi_reduction <add>, %36, %cst_5 [2] : vector<2x14x32xf32> to vector<2x14xf32>
    %38 = vector.shape_cast %37 : vector<2x14xf32> to vector<2x14x1xf32>
    %cst_6 = arith.constant 3.200000e+01 : f32
    %39 = vector.broadcast %cst_6 : f32 to vector<2x14x1xf32>
    %40 = arith.divf %38, %39 : vector<2x14x1xf32>
    %cst_7 = arith.constant 9.99999974E-6 : f32
    %41 = vector.broadcast %cst_7 : f32 to vector<2x14x1xf32>
    %42 = arith.addf %40, %41 : vector<2x14x1xf32>
    %43 = math.rsqrt %42 : vector<2x14x1xf32>
    %44 = vector.broadcast %43 : vector<2x14x1xf32> to vector<2x14x32xf32>
    %45 = arith.mulf %35, %44 : vector<2x14x32xf32>
    %46 = vector.shape_cast %4 : vector<1x32xf32> to vector<1x1x32xf32>
    %47 = vector.broadcast %46 : vector<1x1x32xf32> to vector<2x14x32xf32>
    %48 = arith.mulf %45, %47 : vector<2x14x32xf32>
    %49 = vector.shape_cast %5 : vector<1x32xf32> to vector<1x1x32xf32>
    %50 = vector.broadcast %49 : vector<1x1x32xf32> to vector<2x14x32xf32>
    %51 = arith.addf %48, %50 : vector<2x14x32xf32>
    %cst_8 = arith.constant 0.000000e+00 : f32
    %52 = vector.broadcast %cst_8 : f32 to vector<2x14x32xf32>
    %53 = arith.maximumf %51, %52 : vector<2x14x32xf32>
    %54 = vector.extract_strided_slice %53 {offsets = [0, 0, 0], sizes = [2, 12, 32], strides = [1, 1, 1]} : vector<2x14x32xf32> to vector<2x12x32xf32>
    %55 = vector.extract_strided_slice %6 {offsets = [0, 0], sizes = [1, 32], strides = [1, 1]} : vector<3x32xf32> to vector<1x32xf32>
    %56 = vector.shape_cast %55 : vector<1x32xf32> to vector<1x1x32xf32>
    %57 = vector.broadcast %56 : vector<1x1x32xf32> to vector<2x12x32xf32>
    %58 = arith.mulf %54, %57 : vector<2x12x32xf32>
    %59 = vector.shape_cast %7 : vector<1x32xf32> to vector<1x1x32xf32>
    %60 = vector.broadcast %59 : vector<1x1x32xf32> to vector<2x12x32xf32>
    %61 = arith.addf %58, %60 : vector<2x12x32xf32>
    %62 = vector.extract_strided_slice %53 {offsets = [0, 1, 0], sizes = [2, 12, 32], strides = [1, 1, 1]} : vector<2x14x32xf32> to vector<2x12x32xf32>
    %63 = vector.extract_strided_slice %6 {offsets = [1, 0], sizes = [1, 32], strides = [1, 1]} : vector<3x32xf32> to vector<1x32xf32>
    %64 = vector.shape_cast %63 : vector<1x32xf32> to vector<1x1x32xf32>
    %65 = vector.broadcast %64 : vector<1x1x32xf32> to vector<2x12x32xf32>
    %66 = arith.mulf %62, %65 : vector<2x12x32xf32>
    %67 = arith.addf %61, %66 : vector<2x12x32xf32>
    %68 = vector.extract_strided_slice %53 {offsets = [0, 2, 0], sizes = [2, 12, 32], strides = [1, 1, 1]} : vector<2x14x32xf32> to vector<2x12x32xf32>
    %69 = vector.extract_strided_slice %6 {offsets = [2, 0], sizes = [1, 32], strides = [1, 1]} : vector<3x32xf32> to vector<1x32xf32>
    %70 = vector.shape_cast %69 : vector<1x32xf32> to vector<1x1x32xf32>
    %71 = vector.broadcast %70 : vector<1x1x32xf32> to vector<2x12x32xf32>
    %72 = arith.mulf %68, %71 : vector<2x12x32xf32>
    %73 = arith.addf %67, %72 : vector<2x12x32xf32>
    %cst_9 = arith.constant dense<0.000000e+00> : vector<2x12xf32>
    %74 = vector.multi_reduction <add>, %73, %cst_9 [2] : vector<2x12x32xf32> to vector<2x12xf32>
    %75 = vector.shape_cast %74 : vector<2x12xf32> to vector<2x12x1xf32>
    %cst_10 = arith.constant 3.200000e+01 : f32
    %76 = vector.broadcast %cst_10 : f32 to vector<2x12x1xf32>
    %77 = arith.divf %75, %76 : vector<2x12x1xf32>
    %78 = vector.broadcast %77 : vector<2x12x1xf32> to vector<2x12x32xf32>
    %79 = arith.subf %73, %78 : vector<2x12x32xf32>
    %80 = arith.mulf %79, %79 : vector<2x12x32xf32>
    %cst_11 = arith.constant dense<0.000000e+00> : vector<2x12xf32>
    %81 = vector.multi_reduction <add>, %80, %cst_11 [2] : vector<2x12x32xf32> to vector<2x12xf32>
    %82 = vector.shape_cast %81 : vector<2x12xf32> to vector<2x12x1xf32>
    %cst_12 = arith.constant 3.200000e+01 : f32
    %83 = vector.broadcast %cst_12 : f32 to vector<2x12x1xf32>
    %84 = arith.divf %82, %83 : vector<2x12x1xf32>
    %cst_13 = arith.constant 9.99999974E-6 : f32
    %85 = vector.broadcast %cst_13 : f32 to vector<2x12x1xf32>
    %86 = arith.addf %84, %85 : vector<2x12x1xf32>
    %87 = math.rsqrt %86 : vector<2x12x1xf32>
    %88 = vector.broadcast %87 : vector<2x12x1xf32> to vector<2x12x32xf32>
    %89 = arith.mulf %79, %88 : vector<2x12x32xf32>
    %90 = vector.shape_cast %8 : vector<1x32xf32> to vector<1x1x32xf32>
    %91 = vector.broadcast %90 : vector<1x1x32xf32> to vector<2x12x32xf32>
    %92 = arith.mulf %89, %91 : vector<2x12x32xf32>
    %93 = vector.shape_cast %9 : vector<1x32xf32> to vector<1x1x32xf32>
    %94 = vector.broadcast %93 : vector<1x1x32xf32> to vector<2x12x32xf32>
    %95 = arith.addf %92, %94 : vector<2x12x32xf32>
    %cst_14 = arith.constant 0.000000e+00 : f32
    %96 = vector.broadcast %cst_14 : f32 to vector<2x12x32xf32>
    %97 = arith.maximumf %95, %96 : vector<2x12x32xf32>
    %cst_15 = arith.constant dense<0xFF800000> : vector<2x32xf32>
    %98 = vector.multi_reduction <maximumf>, %97, %cst_15 [1] : vector<2x12x32xf32> to vector<2x32xf32>
    %c0_16 = arith.constant 0 : index
    %c0_17 = arith.constant 0 : index
    %99 = vector.load %arg3[%c0_16, %c0_17] : memref<2x32xf32, #tpu.memory_space<vmem>>, vector<2x32xf32>
    tpu.vector_store %arg3[%c0_16, %c0_17], %98 {strides = array<i32>} : memref<2x32xf32, #tpu.memory_space<vmem>>, vector<2x32xf32>,
    return
  }
  func.func @transform_0(%arg0: i32) -> (i32, i32, i32) {
    %c0_i32 = arith.constant 0 : i32
    %c0_i32_0 = arith.constant 0 : i32
    %c0_i32_1 = arith.constant 0 : i32
    return %arg0, %c0_i32, %c0_i32_0 : i32, i32, i32
  }
  func.func @transform_1(%arg0: i32) -> (i32, i32) {
    %c0_i32 = arith.constant 0 : i32
    %c0_i32_0 = arith.constant 0 : i32
    %c0_i32_1 = arith.constant 0 : i32
    return %c0_i32, %c0_i32_0 : i32, i32
  }
  func.func @transform_2(%arg0: i32) -> (i32, i32) {
    %c0_i32 = arith.constant 0 : i32
    %c0_i32_0 = arith.constant 0 : i32
    return %arg0, %c0_i32 : i32, i32
  }
}

</mosaic_0001>

<llo_original>
// kernel: temporal_conv_forward.1
$region0: #{temporal_conv_forward.1}
  #allocation0 [shape = 'u32[]', space=smem, size = 0x4, offset = 0x4, fixed_abs, tag = 'smem constant byte address 0x4 - core index']
  #allocation1 [shape = 'u32[72,128]{1,0:T(1,128)}', space=vmem, size = 0x9000, scoped, tag = 'internal scratch']
  %s0 = inlined_call_operand.hbm [shape: f32[2,16,32], index: 0, kind: input, shape index: {}]
  %s1 = inlined_call_operand.vmem [shape: f32[12,32], index: 1, kind: input, shape index: {}]
  %s2 = inlined_call_operand.hbm [shape: f32[2,32], index: 2, kind: output, shape index: {}]
  %s3 = sld [smem:[#allocation0]]
  $region22: #{temporal_conv_forward.1} parent=0
    _
  %s5 = ssub.s32 1, %s3
  %s6 = scalar_select 0, %s5, %s3
  $region1: #{temporal_conv_forward.1} parent=0
    #allocation2 [shape = 'u8[16384]{0}', space=vmem, size = 0x4000, scoped, tag = 'input window, operand 0, single buffered']
    #allocation3 [shape = 's32[1]{0}', space=sflag, size = 0x4, scoped, tag = 'scoped memory for temporal_conv_forward.1']
    #allocation4 [shape = 's32[1]{0}', space=sflag, size = 0x4, scoped, tag = 'scoped memory for temporal_conv_forward.1']
    #allocation5 [shape = 'u8[1024]{0}', space=vmem, size = 0x400, scoped, tag = 'output window, operand 0, single buffered']
    %7 = vsyncpa [#allocation3], 0
    %8 = vsyncpa [#allocation4], 0
    // Predicated region
    $region2: #{temporal_conv_forward.1} parent=1 // pred_check
      _
    $region3: #{temporal_conv_forward.1} parent=1 // pred_check_branch
      %10 = sbr.rel (0) target = $region5
    $region4: #{temporal_conv_forward.1} parent=1 // pred_region
      %12 = vsyncadd [#allocation3], 0
      %s13 = sshll.u32 %s0, 4
      %s14 = int_to_ptr.hbm [resolvable:$true] %s13
      %s15 = sshll.u32 [#allocation2], 4
      %s16 = int_to_ptr.vmem [resolvable:$true] %s15
      %21 = dma.hbm_to_vmem [thread:$0]  %s14, 512, %s16, [#allocation3], 128, 128, 8
    $region5: #{temporal_conv_forward.1} parent=1 // pred_fallthru
      _
    // Predicated region
    $region6: #{temporal_conv_forward.1} parent=1 // pred_check
      _
    $region7: #{temporal_conv_forward.1} parent=1 // pred_check_branch
      %23 = sbr.rel (0) target = $region9
    $region8: #{temporal_conv_forward.1} parent=1 // pred_region
      _
    $region9: #{temporal_conv_forward.1} parent=1 // pred_fallthru
      _
    // Predicated region
    $region10: #{temporal_conv_forward.1} parent=1 // pred_check
      _
    $region11: #{temporal_conv_forward.1} parent=1 // pred_check_branch
      %25 = sbr.rel (0) target = $region13
    $region12: #{temporal_conv_forward.1} parent=1 // pred_region
      %27 = dma.done [#allocation3], 512
    $region13: #{temporal_conv_forward.1} parent=1 // pred_fallthru
      _
    %v28 = vld [vmem:[#allocation2] sm:$0xff]
    %v29 = vld [vmem:[#allocation2 + $0x8] sm:$0xff]
    %v30 = vld [vmem:[#allocation2 + $0x10] sm:$0xff]
    %v31 = vld [vmem:[#allocation2 + $0x18] sm:$0xff]
    %v32 = vld [vmem:[%s1] sm:$0xff]
    %v33 = vld [vmem:[%s1 + $0x8] sm:$0xf]
    %v34 = vperm.slane %v32, 0
    %v35 = vmul.f32 %v28, %v34
    %v36 = vmul.f32 %v29, %v34
    %v37 = vmul.f32 %v30, %v34
    %v38 = vmul.f32 %v31, %v34
    %v39 = vperm.slane %v32, 3
    %v40 = vadd.f32 %v35, %v39
    %v41 = vadd.f32 %v36, %v39
    %v42 = vadd.f32 %v37, %v39
    %v43 = vadd.f32 %v38, %v39
    %v44 = vperm.slane %v32, 1
    %v45 = vmul.f32 %v28, %v44
    %v46 = vmul.f32 %v29, %v44
    %v47 = vmul.f32 %v30, %v44
    %v48 = vmul.f32 %v31, %v44
    %vm53 = vcmask 1046528
    %v54 = vrot.slane %v45, 1
    %v55 = vrot.slane %v46, 1
    %v56 = vsel %vm53, %v54, %v55
    %v57 = vrot.slane %v47, 1
    %v58 = vrot.slane %v48, 1
    %v59 = vsel %vm53, %v57, %v58
    %v64 = vadd.f32 %v40, %v56
    %v65 = vadd.f32 %v41, %v55
    %v66 = vadd.f32 %v42, %v59
    %v67 = vadd.f32 %v43, %v58
    %v68 = vperm.slane %v32, 2
    %v69 = vmul.f32 %v28, %v68
    %v70 = vmul.f32 %v29, %v68
    %v71 = vmul.f32 %v30, %v68
    %v72 = vmul.f32 %v31, %v68
    %vm77 = vcmask 1045504
    %v78 = vrot.slane %v69, 2
    %v79 = vrot.slane %v70, 2
    %v80 = vsel %vm77, %v78, %v79
    %v81 = vrot.slane %v71, 2
    %v82 = vrot.slane %v72, 2
    %v83 = vsel %vm77, %v81, %v82
    %v88 = vadd.f32 %v64, %v80
    %v89 = vadd.f32 %v65, %v79
    %v90 = vadd.f32 %v66, %v83
    %v91 = vadd.f32 %v67, %v82
    %vm92 = vcmask 261120
    %v93 = vsel %vm92, %v88, 0.0
    %94 = vadd.xlane.f32.xlu0 %v93
    %v95 = vpop.xlane.xlu0 %94
    %vm96 = vcmask 259072
    %v97 = vsel %vm96, %v89, 0.0
    %98 = vadd.xlane.f32.xlu0 %v97
    %v99 = vpop.xlane.xlu0 %98
    %v100 = vsel %vm92, %v90, 0.0
    %101 = vadd.xlane.f32.xlu0 %v100
    %v102 = vpop.xlane.xlu0 %101
    %v103 = vsel %vm96, %v91, 0.0
    %104 = vadd.xlane.f32.xlu0 %v103
    %v105 = vpop.xlane.xlu0 %104
    %v106 = vrcp.pop 32.0
    %v107 = vmul.f32 32.0, %v106
    %v108 = vsub.f32 1.0, %v107
    %v109 = vmul.f32 %v106, %v108
    %v110 = vadd.f32 %v106, %v109
    %vm111 = vweird.f32 %v106
    %v112 = vsel %vm111, %v106, %v110
    %v113 = vmul.f32 %v95, %v112
    %v114 = vmul.f32 %v99, %v112
    %v115 = vmul.f32 %v102, %v112
    %v116 = vmul.f32 %v105, %v112
    %v117 = vsub.f32 %v88, %v113
    %v118 = vsub.f32 %v89, %v114
    %v119 = vsub.f32 %v90, %v115
    %v120 = vsub.f32 %v91, %v116
    %v121 = vmul.f32 %v117, %v117
    %v122 = vmul.f32 %v118, %v118
    %v123 = vmul.f32 %v119, %v119
    %v124 = vmul.f32 %v120, %v120
    %v125 = vsel %vm92, %v121, 0.0
    %126 = vadd.xlane.f32.xlu0 %v125
    %v127 = vpop.xlane.xlu0 %126
    %v128 = vsel %vm96, %v122, 0.0
    %129 = vadd.xlane.f32.xlu0 %v128
    %v130 = vpop.xlane.xlu0 %129
    %v131 = vsel %vm92, %v123, 0.0
    %132 = vadd.xlane.f32.xlu0 %v131
    %v133 = vpop.xlane.xlu0 %132
    %v134 = vsel %vm96, %v124, 0.0
    %135 = vadd.xlane.f32.xlu0 %v134
    %v136 = vpop.xlane.xlu0 %135
    %v137 = vmul.f32 %v127, %v112
    %v138 = vmul.f32 %v130, %v112
    %v139 = vmul.f32 %v133, %v112
    %v140 = vmul.f32 %v136, %v112
    %v141 = vadd.f32 %v137, 1e-05
    %v142 = vadd.f32 %v138, 1e-05
    %v143 = vadd.f32 %v139, 1e-05
    %v144 = vadd.f32 %v140, 1e-05
    %v145 = vrsqrt.pop %v141
    %v146 = vmul.f32 %v145, %v141
    %v147 = vmul.f32 %v146, %v145
    %v148 = vmul.f32 0.5, %v147
    %v149 = vsub.f32 1.5, %v148
    %v150 = vmul.f32 %v145, %v149
    %vm151 = vweird.f32 %v141
    %vm152 = vweird.f32 %v145
    %vm153 = vmor %vm151, %vm152
    %v154 = vsel %vm153, %v145, %v150
    %v155 = vrsqrt.pop %v142
    %v156 = vmul.f32 %v155, %v142
    %v157 = vmul.f32 %v156, %v155
    %v158 = vmul.f32 0.5, %v157
    %v159 = vsub.f32 1.5, %v158
    %v160 = vmul.f32 %v155, %v159
    %vm161 = vweird.f32 %v142
    %vm162 = vweird.f32 %v155
    %vm163 = vmor %vm161, %vm162
    %v164 = vsel %vm163, %v155, %v160
    %v165 = vrsqrt.pop %v143
    %v166 = vmul.f32 %v165, %v143
    %v167 = vmul.f32 %v166, %v165
    %v168 = vmul.f32 0.5, %v167
    %v169 = vsub.f32 1.5, %v168
    %v170 = vmul.f32 %v165, %v169
    %vm171 = vweird.f32 %v143
    %vm172 = vweird.f32 %v165
    %vm173 = vmor %vm171, %vm172
    %v174 = vsel %vm173, %v165, %v170
    %v175 = vrsqrt.pop %v144
    %v176 = vmul.f32 %v175, %v144
    %v177 = vmul.f32 %v176, %v175
    %v178 = vmul.f32 0.5, %v177
    %v179 = vsub.f32 1.5, %v178
    %v180 = vmul.f32 %v175, %v179
    %vm181 = vweird.f32 %v144
    %vm182 = vweird.f32 %v175
    %vm183 = vmor %vm181, %vm182
    %v184 = vsel %vm183, %v175, %v180
    %v185 = vmul.f32 %v117, %v154
    %v186 = vmul.f32 %v118, %v164
    %v187 = vmul.f32 %v119, %v174
    %v188 = vmul.f32 %v120, %v184
    %v189 = vperm.slane %v32, 4
    %v190 = vmul.f32 %v185, %v189
    %v191 = vmul.f32 %v186, %v189
    %v192 = vmul.f32 %v187, %v189
    %v193 = vmul.f32 %v188, %v189
    %v194 = vperm.slane %v32, 5
    %v195 = vadd.f32 %v190, %v194
    %v196 = vadd.f32 %v191, %v194
    %v197 = vadd.f32 %v192, %v194
    %v198 = vadd.f32 %v193, %v194
    %v199 = vmax.f32 %v195, 0.0
    %v200 = vmax.f32 %v196, 0.0
    %v201 = vmax.f32 %v197, 0.0
    %v202 = vmax.f32 %v198, 0.0
    %v203 = vperm.slane %v32, 6
    %v204 = vmul.f32 %v199, %v203
    %v205 = vmul.f32 %v200, %v203
    %v206 = vmul.f32 %v201, %v203
    %v207 = vmul.f32 %v202, %v203
    %v208 = vperm.slane %v33, 1
    %v209 = vadd.f32 %v204, %v208
    %v210 = vadd.f32 %v205, %v208
    %v211 = vadd.f32 %v206, %v208
    %v212 = vadd.f32 %v207, %v208
    %v213 = vperm.slane %v32, 7
    %v214 = vmul.f32 %v199, %v213
    %v215 = vmul.f32 %v200, %v213
    %v216 = vmul.f32 %v201, %v213
    %v217 = vmul.f32 %v202, %v213
    %v222 = vrot.slane %v214, 1
    %v223 = vrot.slane %v215, 1
    %v224 = vsel %vm53, %v222, %v223
    %v225 = vrot.slane %v216, 1
    %v226 = vrot.slane %v217, 1
    %v227 = vsel %vm53, %v225, %v226
    %v232 = vadd.f32 %v209, %v224
    %v233 = vadd.f32 %v210, %v223
    %v234 = vadd.f32 %v211, %v227
    %v235 = vadd.f32 %v212, %v226
    %v236 = vperm.slane %v33, 0
    %v237 = vmul.f32 %v199, %v236
    %v238 = vmul.f32 %v200, %v236
    %v239 = vmul.f32 %v201, %v236
    %v240 = vmul.f32 %v202, %v236
    %v245 = vrot.slane %v237, 2
    %v246 = vrot.slane %v238, 2
    %v247 = vsel %vm77, %v245, %v246
    %v248 = vrot.slane %v239, 2
    %v249 = vrot.slane %v240, 2
    %v250 = vsel %vm77, %v248, %v249
    %v255 = vadd.f32 %v232, %v247
    %v256 = vadd.f32 %v233, %v246
    %v257 = vadd.f32 %v234, %v250
    %v258 = vadd.f32 %v235, %v249
    %v259 = vsel %vm92, %v255, 0.0
    %260 = vadd.xlane.f32.xlu0 %v259
    %v261 = vpop.xlane.xlu0 %260
    %vm262 = vcmask 257024
    %v263 = vsel %vm262, %v256, 0.0
    %264 = vadd.xlane.f32.xlu0 %v263
    %v265 = vpop.xlane.xlu0 %264
    %v266 = vsel %vm92, %v257, 0.0
    %267 = vadd.xlane.f32.xlu0 %v266
    %v268 = vpop.xlane.xlu0 %267
    %v269 = vsel %vm262, %v258, 0.0
    %270 = vadd.xlane.f32.xlu0 %v269
    %v271 = vpop.xlane.xlu0 %270
    %v272 = vmul.f32 %v261, %v112
    %v273 = vmul.f32 %v265, %v112
    %v274 = vmul.f32 %v268, %v112
    %v275 = vmul.f32 %v271, %v112
    %v276 = vsub.f32 %v255, %v272
    %v277 = vsub.f32 %v256, %v273
    %v278 = vsub.f32 %v257, %v274
    %v279 = vsub.f32 %v258, %v275
    %v280 = vmul.f32 %v276, %v276
    %v281 = vmul.f32 %v277, %v277
    %v282 = vmul.f32 %v278, %v278
    %v283 = vmul.f32 %v279, %v279
    %v284 = vsel %vm92, %v280, 0.0
    %285 = vadd.xlane.f32.xlu0 %v284
    %v286 = vpop.xlane.xlu0 %285
    %v287 = vsel %vm262, %v281, 0.0
    %288 = vadd.xlane.f32.xlu0 %v287
    %v289 = vpop.xlane.xlu0 %288
    %v290 = vsel %vm92, %v282, 0.0
    %291 = vadd.xlane.f32.xlu0 %v290
    %v292 = vpop.xlane.xlu0 %291
    %v293 = vsel %vm262, %v283, 0.0
    %294 = vadd.xlane.f32.xlu0 %v293
    %v295 = vpop.xlane.xlu0 %294
    %v296 = vmul.f32 %v286, %v112
    %v297 = vmul.f32 %v289, %v112
    %v298 = vmul.f32 %v292, %v112
    %v299 = vmul.f32 %v295, %v112
    %v300 = vadd.f32 %v296, 1e-05
    %v301 = vadd.f32 %v297, 1e-05
    %v302 = vadd.f32 %v298, 1e-05
    %v303 = vadd.f32 %v299, 1e-05
    %v304 = vrsqrt.pop %v300
    %v305 = vmul.f32 %v304, %v300
    %v306 = vmul.f32 %v305, %v304
    %v307 = vmul.f32 0.5, %v306
    %v308 = vsub.f32 1.5, %v307
    %v309 = vmul.f32 %v304, %v308
    %vm310 = vweird.f32 %v300
    %vm311 = vweird.f32 %v304
    %vm312 = vmor %vm310, %vm311
    %v313 = vsel %vm312, %v304, %v309
    %v314 = vrsqrt.pop %v301
    %v315 = vmul.f32 %v314, %v301
    %v316 = vmul.f32 %v315, %v314
    %v317 = vmul.f32 0.5, %v316
    %v318 = vsub.f32 1.5, %v317
    %v319 = vmul.f32 %v314, %v318
    %vm320 = vweird.f32 %v301
    %vm321 = vweird.f32 %v314
    %vm322 = vmor %vm320, %vm321
    %v323 = vsel %vm322, %v314, %v319
    %v324 = vrsqrt.pop %v302
    %v325 = vmul.f32 %v324, %v302
    %v326 = vmul.f32 %v325, %v324
    %v327 = vmul.f32 0.5, %v326
    %v328 = vsub.f32 1.5, %v327
    %v329 = vmul.f32 %v324, %v328
    %vm330 = vweird.f32 %v302
    %vm331 = vweird.f32 %v324
    %vm332 = vmor %vm330, %vm331
    %v333 = vsel %vm332, %v324, %v329
    %v334 = vrsqrt.pop %v303
    %v335 = vmul.f32 %v334, %v303
    %v336 = vmul.f32 %v335, %v334
    %v337 = vmul.f32 0.5, %v336
    %v338 = vsub.f32 1.5, %v337
    %v339 = vmul.f32 %v334, %v338
    %vm340 = vweird.f32 %v303
    %vm341 = vweird.f32 %v334
    %vm342 = vmor %vm340, %vm341
    %v343 = vsel %vm342, %v334, %v339
    %v344 = vmul.f32 %v276, %v313
    %v345 = vmul.f32 %v277, %v323
    %v346 = vmul.f32 %v278, %v333
    %v347 = vmul.f32 %v279, %v343
    %v348 = vperm.slane %v33, 2
    %v349 = vmul.f32 %v344, %v348
    %v350 = vmul.f32 %v345, %v348
    %v351 = vmul.f32 %v346, %v348
    %v352 = vmul.f32 %v347, %v348
    %v353 = vperm.slane %v33, 3
    %v354 = vadd.f32 %v349, %v353
    %v355 = vadd.f32 %v350, %v353
    %v356 = vadd.f32 %v351, %v353
    %v357 = vadd.f32 %v352, %v353
    %v358 = vmax.f32 %v354, 0.0
    %v359 = vmax.f32 %v355, 0.0
    %v360 = vmax.f32 %v356, 0.0
    %v361 = vmax.f32 %v357, 0.0
    %v362 = vsel %vm92, %v358, -inf
    %v363 = vsel %vm262, %v359, -inf
    %v364 = vmax.f32 %v362, %v363
    %v365 = vrot.slane %v364, 4
    %v366 = vmax.f32 %v364, %v365
    %v367 = vrot.slane %v366, 2
    %v368 = vmax.f32 %v366, %v367
    %v369 = vrot.slane %v368, 1
    %v370 = vmax.f32 %v368, %v369
    %v371 = vsel %vm92, %v360, -inf
    %v372 = vsel %vm262, %v361, -inf
    %v373 = vmax.f32 %v371, %v372
    %v374 = vrot.slane %v373, 4
    %v375 = vmax.f32 %v373, %v374
    %v376 = vrot.slane %v375, 2
    %v377 = vmax.f32 %v375, %v376
    %v378 = vrot.slane %v377, 1
    %v379 = vmax.f32 %v377, %v378
    %vm382 = vcmask 1041409
    %v383 = vsel %vm382, %v379, %v370
    %vm385 = vcmask 254976
    %386 = vst.msk [vmem:[#allocation5] sm:$0x3] %vm385, %v383
    // Predicated region
    $region14: #{temporal_conv_forward.1} parent=1 // pred_check
      _
    $region15: #{temporal_conv_forward.1} parent=1 // pred_check_branch
      %388 = sbr.rel (0) target = $region17
    $region16: #{temporal_conv_forward.1} parent=1 // pred_region
      %390 = vsyncadd [#allocation4], 0
      %s392 = sshll.u32 [#allocation5], 4
      %s393 = int_to_ptr.vmem [resolvable:$true] %s392
      %s394 = sshll.u32 %s2, 4
      %s395 = int_to_ptr.hbm [resolvable:$true] %s394
      %397 = dma.vmem_to_hbm [thread:$0]  %s393, 32, %s395, [#allocation4]
    $region17: #{temporal_conv_forward.1} parent=1 // pred_fallthru
      _
    // Predicated region
    $region18: #{temporal_conv_forward.1} parent=1 // pred_check
      _
    $region19: #{temporal_conv_forward.1} parent=1 // pred_check_branch
      %399 = sbr.rel (0) target = $region21
    $region20: #{temporal_conv_forward.1} parent=1 // pred_region
      %401 = dma.done [#allocation4], 32
    $region21: #{temporal_conv_forward.1} parent=1 // pred_fallthru
      _
    %402 = vsyncpa [#allocation3], 1
    %403 = vsyncpa [#allocation4], 1

</llo_original>
